<compile_context>
chip_gen: v7x
topology: tpu7x:2x2x1
jax: 0.10.0
libtpu: 0.0.40
codegen_flags: <defaults>
</compile_context>

<pallas_src>
import functools

import jax
import jax.numpy as jnp
from jax.experimental import pallas as pl
from jax.experimental.pallas import tpu as pltpu


def _round_up(v, m):
    return (v + m - 1) // m * m


def _tpu_config():
    """Generation-aware tiling / VMEM budgets (review: size tiles per chip)."""
    kind = ""
    try:
        kind = jax.devices()[0].device_kind.lower()
    except Exception:
        pass
    if "v5 lite" in kind or "v5e" in kind:
        # 4x128x128 MXU + smallest scoped-VMEM default: TN=128, spend VMEM on TM.
        return dict(gen="v5e", budget=12 << 20, vmem_limit=96 << 20, tn_max=128)
    if "v7" in kind or "7x" in kind:
        # 64 MiB physical VMEM per core; keep >=2 parallel N steps for 2 TCs.
        return dict(gen="v7x", budget=20 << 20, vmem_limit=48 << 20, tn_max=256)
    if "v6" in kind:
        return dict(gen="v6e", budget=40 << 20, vmem_limit=100 << 20, tn_max=512)
    # Unknown generation: stay under the smallest common scoped default.
    return dict(gen="other", budget=10 << 20, vmem_limit=None, tn_max=256)


_CFG = _tpu_config()


def _plan_gemm_tiles(M, Kp, Np, has_res, cfg):
    """Pick (TM, Mp, TN): the largest M tile whose double-buffered working set fits
    the per-generation VMEM budget; TN widened for tiny-M deep stages."""

    def ws_bytes(tm, tn):
        blk = tm * Kp + Kp * tn + tm * tn * (2 if has_res else 1)   # bf16 blocks
        return 2 * (blk * 2 + tn * 4)                                # x2 buffers + f32 bias

    tn_c = [t for t in (512, 256, 128) if t <= cfg["tn_max"] and Np % t == 0]
    if not tn_c:
        tn_c = [128]
    if M > 128:
        # wide-M stages: keep the weight panel modest and the N axis parallel-steppy.
        tn_c = [t for t in tn_c if t <= 256] or [128]
    if cfg["gen"] == "v7x":
        wide = [t for t in tn_c if Np // t >= 2]
        if wide:
            tn_c = wide

    if M <= 128:
        tm_c = [_round_up(M, 16)]
    else:
        allow = M + max(M // 8, 256)   # cap zero-row pad waste at ~12.5% (or 256 rows)
        tm_c = [t for t in (1024, 512, 384, 256, 128) if _round_up(M, t) <= allow]
        if not tm_c:
            tm_c = [128]

    for tm in tm_c:
        for tn in tn_c:
            if ws_bytes(tm, tn) <= cfg["budget"]:
                return tm, _round_up(M, tm), tn
    tm = tm_c[-1]
    return tm, _round_up(M, tm), 128


# ----------------------------------------------------------------------------
# Pallas kernels
# ----------------------------------------------------------------------------
def _gemm_bias_kernel(*refs, relu, has_res):
    """Full-K GEMM tile with fused bias add, optional residual add and ReLU.

    Operands are bf16 (MXU native, BN scale pre-folded into the weights);
    accumulation and the epilogue run in f32; the store casts to bf16.
    """
    if has_res:
        x_ref, w_ref, b_ref, r_ref, o_ref = refs
    else:
        x_ref, w_ref, b_ref, o_ref = refs
        r_ref = None

    y = jnp.dot(x_ref[...], w_ref[...], preferred_element_type=jnp.float32)
    y = y + b_ref[...]
    if r_ref is not None:
        y = y + r_ref[...].astype(jnp.float32)
    if relu:
        y = jnp.maximum(y, 0.0)
    o_ref[...] = y.astype(o_ref.dtype)


def _maxpool_kernel(p_ref, o_ref):
    # p_ref: [3, TM, C] vertical window taps (taps on the leading, non-layout axis).
    o_ref[...] = jnp.max(p_ref[...], axis=0)


# ----------------------------------------------------------------------------
# Pallas wrappers
# ----------------------------------------------------------------------------
def gemm_bias_act(x2d, w2d, bias2d, residual=None, relu=True):
    """(M,K) x (Kp,Np) GEMM with fused bias (+residual, +ReLU).

    w2d / bias2d arrive prepared (scale-folded, cin/cout padded, bf16 / f32).
    K is contracted in a single kernel pass (ResNet50 K <= 4608 fits VMEM on all
    generations with the per-chip budgets above).
    """
    M, K = x2d.shape
    Kp, Np = w2d.shape
    assert Kp >= K and Np % 128 == 0
    has_res = residual is not None

    TM, Mp, TN = _plan_gemm_tiles(M, Kp, Np, has_res, _CFG)

    xp = x2d.astype(jnp.bfloat16)
    if (Mp - M) or (Kp - K):
        xp = jnp.pad(xp, ((0, Mp - M), (0, Kp - K)))

    inputs = [xp, w2d, bias2d]
    in_specs = [
        pl.BlockSpec((TM, Kp), lambda i, j: (i, 0)),
        pl.BlockSpec((Kp, TN), lambda i, j: (0, j)),
        pl.BlockSpec((1, TN), lambda i, j: (0, j)),
    ]
    if has_res:
        rp = residual.astype(jnp.bfloat16)
        if Mp != M:
            rp = jnp.pad(rp, ((0, Mp - M), (0, 0)))
        inputs.append(rp)
        in_specs.append(pl.BlockSpec((TM, TN), lambda i, j: (i, j)))

    kernel = functools.partial(_gemm_bias_kernel, relu=relu, has_res=has_res)

    cp_kwargs = dict(dimension_semantics=("parallel", "parallel"))
    if _CFG["vmem_limit"] is not None:
        cp_kwargs["vmem_limit_bytes"] = _CFG["vmem_limit"]

    flops = 2 * Mp * Kp * Np
    bytes_accessed = 2 * (Mp * Kp + Kp * Np + Mp * Np * (2 if has_res else 1)) + 4 * Np

    out = pl.pallas_call(
        kernel,
        out_shape=jax.ShapeDtypeStruct((Mp, Np), jnp.bfloat16),
        grid_spec=pltpu.PrefetchScalarGridSpec(
            num_scalar_prefetch=0,
            grid=(Mp // TM, Np // TN),
            in_specs=in_specs,
            out_specs=pl.BlockSpec((TM, TN), lambda i, j: (i, j)),
        ),
        compiler_params=pltpu.CompilerParams(**cp_kwargs),
        cost_estimate=pl.CostEstimate(flops=flops, transcendentals=0,
                                      bytes_accessed=bytes_accessed),
    )(*inputs)
    return out


@functools.partial(jax.jit, static_argnames=("kh", "kw", "stride", "pad", "relu"))
def conv_bn(x, w2d, bias2d, residual=None, *, kh, kw, stride, pad, relu):
    """x: NHWC (channels possibly 128-padded), w2d: (Kp,Np) prepared bf16 weight.

    Conv + folded BN via im2col GEMM. Output keeps channels padded to Np.
    """
    N, H, W, C = x.shape
    Kp, Np = w2d.shape
    Ho = (H + 2 * pad - kh) // stride + 1
    Wo = (W + 2 * pad - kw) // stride + 1
    M = N * Ho * Wo

    if kh == 1 and kw == 1 and pad == 0:
        xs = x if stride == 1 else x[:, ::stride, ::stride, :]
        patches = xs.reshape(M, C)
    else:
        xpad = jnp.pad(x, ((0, 0), (pad, pad), (pad, pad), (0, 0)))
        cols = [xpad[:, i:i + stride * Ho:stride, j:j + stride * Wo:stride, :]
                for i in range(kh) for j in range(kw)]
        patches = jnp.stack(cols, axis=3).reshape(M, kh * kw * C)

    res2d = None if residual is None else residual.reshape(M, Np)

    out = gemm_bias_act(patches, w2d, bias2d, residual=res2d, relu=relu)
    return out[:M].reshape(N, Ho, Wo, Np)


@jax.jit
def maxpool_3x3_s2(x):
    """3x3 / stride-2 / pad-1 max pool (torch semantics: padded taps never win).

    Horizontal 3-tap max runs as a fused XLA maximum tree (reads the input once);
    only the 3 vertical taps (3, M, C) feed the Pallas kernel (lane-dense C=128).
    """
    N, H, W, C = x.shape
    k, s, pad = 3, 2, 1
    Ho = (H + 2 * pad - k) // s + 1
    Wo = (W + 2 * pad - k) // s + 1
    xp = jnp.pad(x, ((0, 0), (pad, pad), (pad, pad), (0, 0)),
                 constant_values=-jnp.inf)
    # Horizontal (W) max with stride 2 -> (N, H+2, Wo, C), fused by XLA.
    hmax = jnp.maximum(
        jnp.maximum(xp[:, :, 0:s * Wo:s, :], xp[:, :, 1:1 + s * Wo:s, :]),
        xp[:, :, 2:2 + s * Wo:s, :])
    # Vertical taps, decimated by stride 2, on the leading (non-layout) axis.
    M = N * Ho * Wo
    taps = jnp.stack(
        [hmax[:, i:i + s * Ho:s, :, :].reshape(M, C) for i in range(k)], axis=0)

    if M >= 512:
        TM, Mp = 512, _round_up(M, 512)
    else:
        Mp = _round_up(M, 16)
        TM = Mp
    if Mp != M:
        taps = jnp.pad(taps, ((0, 0), (0, Mp - M), (0, 0)),
                       constant_values=-jnp.inf)

    out = pl.pallas_call(
        _maxpool_kernel,
        out_shape=jax.ShapeDtypeStruct((Mp, C), x.dtype),
        grid=(Mp // TM,),
        in_specs=[pl.BlockSpec((k, TM, C), lambda i: (0, i, 0))],
        out_specs=pl.BlockSpec((TM, C), lambda i: (i, 0)),
        compiler_params=pltpu.CompilerParams(dimension_semantics=("parallel",)),
    )(taps)
    return out[:M].reshape(N, Ho, Wo, C)


# ----------------------------------------------------------------------------
# Deterministic synthetic parameters (ResNet50 shapes)
# ----------------------------------------------------------------------------
class KeyGen:
    def __init__(self, seed):
        self.key = jax.random.PRNGKey(seed)

    def __call__(self):
        self.key, sub = jax.random.split(self.key)
        return sub


def make_conv_bn_params(kg, kh, kw, cin, cout):
    fan_in = kh * kw * cin
    w = jax.random.normal(kg(), (kh, kw, cin, cout), jnp.float32) * (2.0 / fan_in) ** 0.5
    gamma = jax.random.uniform(kg(), (cout,), jnp.float32, 0.5, 1.5)
    beta = jax.random.normal(kg(), (cout,), jnp.float32) * 0.1
    mean = jax.random.normal(kg(), (cout,), jnp.float32) * 0.1
    var = jax.random.uniform(kg(), (cout,), jnp.float32, 0.5, 1.5)
    eps = 1e-5
    scale = gamma / jnp.sqrt(var + eps)
    bias = beta - mean * scale
    return {"w": w, "scale": scale, "bias": bias}


def make_resnet50_params(seed=0):
    kg = KeyGen(seed)
    params = {"stem": make_conv_bn_params(kg, 7, 7, 3, 64)}
    layer_cfg = [(64, 3, 1), (128, 4, 2), (256, 6, 2), (512, 3, 2)]
    inplanes = 64
    layers = []
    for planes, blocks, stride in layer_cfg:
        blist = []
        for b in range(blocks):
            s = stride if b == 0 else 1
            block = {
                "conv1": make_conv_bn_params(kg, 1, 1, inplanes, planes),
                "conv2": make_conv_bn_params(kg, 3, 3, planes, planes),
                "conv3": make_conv_bn_params(kg, 1, 1, planes, planes * 4),
                "stride": s,
            }
            if s != 1 or inplanes != planes * 4:
                block["down"] = make_conv_bn_params(kg, 1, 1, inplanes, planes * 4)
            blist.append(block)
            inplanes = planes * 4
        layers.append(blist)
    params["layers"] = layers
    return params


def _prepare_conv_bn(p, pad_cin=True):
    """Fold BN scale into the weights, pad cin/cout to 128 multiples, reshape to the
    2D GEMM operand and cast to bf16, all once at prep time. Padded lanes/rows are
    exactly zero so they stay zero through ReLU and residual adds."""
    w, scale, bias = p["w"], p["scale"], p["bias"]
    kh, kw, cin, cout = w.shape
    cin_p = _round_up(cin, 128) if pad_cin else cin
    Np = _round_up(cout, 128)
    wf = w * scale                                            # fold BN scale (inference)
    wf = jnp.pad(wf, ((0, 0), (0, 0), (0, cin_p - cin), (0, Np - cout)))
    K = kh * kw * cin_p
    Kp = _round_up(K, 16)                                     # only the 7x7 stem pads (147->160)
    w2d = wf.reshape(K, Np)
    if Kp != K:
        w2d = jnp.pad(w2d, ((0, Kp - K), (0, 0)))
    w2d = w2d.astype(jnp.bfloat16)
    bias2d = jnp.pad(bias, (0, Np - cout)).reshape(1, Np).astype(jnp.float32)
    return {"w2d": w2d, "bias2d": bias2d, "kh": kh, "kw": kw}


def prepare_resnet50_params(params):
    prep = {"stem": _prepare_conv_bn(params["stem"], pad_cin=False), "layers": []}
    for layer in params["layers"]:
        blist = []
        for blk in layer:
            pb = {"conv1": _prepare_conv_bn(blk["conv1"]),
                  "conv2": _prepare_conv_bn(blk["conv2"]),
                  "conv3": _prepare_conv_bn(blk["conv3"]),
                  "stride": blk["stride"]}
            if "down" in blk:
                pb["down"] = _prepare_conv_bn(blk["down"])
            blist.append(pb)
        prep["layers"].append(blist)
    return prep


# ----------------------------------------------------------------------------
# ResNet backbone forward
# ----------------------------------------------------------------------------
def bottleneck_forward(x, bp):
    s = bp["stride"]
    identity = x
    c1, c2, c3 = bp["conv1"], bp["conv2"], bp["conv3"]
    out = conv_bn(x, c1["w2d"], c1["bias2d"],
                  kh=c1["kh"], kw=c1["kw"], stride=1, pad=0, relu=True)
    out = conv_bn(out, c2["w2d"], c2["bias2d"],
                  kh=c2["kh"], kw=c2["kw"], stride=s, pad=1, relu=True)
    if "down" in bp:
        d = bp["down"]
        identity = conv_bn(x, d["w2d"], d["bias2d"],
                           kh=d["kh"], kw=d["kw"], stride=s, pad=0, relu=False)
    # conv3 + bias + residual add + final ReLU fused in one Pallas GEMM kernel.
    out = conv_bn(out, c3["w2d"], c3["bias2d"], residual=identity,
                  kh=c3["kh"], kw=c3["kw"], stride=1, pad=0, relu=True)
    return out


def resnet_backbone_forward(x_nchw, prepared):
    x = jnp.transpose(x_nchw, (0, 2, 3, 1))  # NCHW -> NHWC (internal layout)
    feats = []

    # stage0: conv1(7x7,s2) + bn + relu (output kept 128-channel-padded internally)
    st = prepared["stem"]
    x = conv_bn(x, st["w2d"], st["bias2d"], kh=7, kw=7, stride=2, pad=3, relu=True)
    feats.append((x, 64))

    # stage1: maxpool + layer1
    x = maxpool_3x3_s2(x)
    for bp in prepared["layers"][0]:
        x = bottleneck_forward(x, bp)
    feats.append((x, x.shape[-1]))

    # stage2..4: layer2..layer4
    for li in (1, 2, 3):
        for bp in prepared["layers"][li]:
            x = bottleneck_forward(x, bp)
        feats.append((x, x.shape[-1]))

    # Return NCHW f32 with true channel counts (only the stem needs un-padding).
    outs = []
    for f, c in feats:
        if f.shape[-1] != c:
            f = f[..., :c]
        outs.append(jnp.transpose(f, (0, 3, 1, 2)).astype(jnp.float32))
    return outs


if __name__ == "__main__":
    key = jax.random.PRNGKey(0)
    x = jax.random.normal(key, (2, 3, 32, 32), jnp.float32)  # small NCHW input
    params = make_resnet50_params(seed=0)
    prepared = prepare_resnet50_params(params)

    feats = resnet_backbone_forward(x, prepared)
    feats = jax.block_until_ready(feats)

    expected = [(2, 64, 16, 16), (2, 256, 8, 8), (2, 512, 4, 4),
                (2, 1024, 2, 2), (2, 2048, 1, 1)]
    for f, e in zip(feats, expected):
        assert tuple(f.shape) == e, (tuple(f.shape), e)
        assert bool(jnp.all(jnp.isfinite(f)))

    print("KERNEL_OK")
</pallas_src>

<mosaic_0001>
module attributes {stable_mosaic.version = 11 : i64} {
  func.func @_gemm_bias_kernel(%arg0: i32, %arg1: i32, %arg2: memref<512x160xbf16, #tpu.memory_space<vmem>>, %arg3: memref<160x128xbf16, #tpu.memory_space<vmem>>, %arg4: memref<1x128xf32, #tpu.memory_space<vmem>>, %arg5: memref<512x128xbf16, #tpu.memory_space<vmem>>) attributes {dimension_semantics = [#tpu.dimension_semantics<parallel>, #tpu.dimension_semantics<parallel>], iteration_bounds = array<i64: 1, 1>, scalar_prefetch = 0 : i64, scratch_operands = 0 : i64, tpu.core_type = #tpu.core_type<tc>, window_params = [{transform_indices = @transform_0, window_bounds = array<i64: 512, 160>}, {transform_indices = @transform_1, window_bounds = array<i64: 160, 128>}, {transform_indices = @transform_2, window_bounds = array<i64: 1, 128>}, {transform_indices = @transform_3, window_bounds = array<i64: 512, 128>}]} {
    %c0 = arith.constant 0 : index
    %c0_0 = arith.constant 0 : index
    %0 = vector.load %arg2[%c0, %c0_0] : memref<512x160xbf16, #tpu.memory_space<vmem>>, vector<512x160xbf16>
    %c0_1 = arith.constant 0 : index
    %c0_2 = arith.constant 0 : index
    %1 = vector.load %arg3[%c0_1, %c0_2] : memref<160x128xbf16, #tpu.memory_space<vmem>>, vector<160x128xbf16>
    %cst = arith.constant dense<0.000000e+00> : vector<512x128xf32>
    %2 = tpu.matmul %0, %1, %cst {dimension_numbers = #tpu.dot_dimension_numbers<[1], [0], [0], [1], [0, 0, 1, 1], [], []>} : vector<512x160xbf16>, vector<160x128xbf16>, vector<512x128xf32> -> vector<512x128xf32>
    %c0_3 = arith.constant 0 : index
    %c0_4 = arith.constant 0 : index
    %3 = vector.load %arg4[%c0_3, %c0_4] : memref<1x128xf32, #tpu.memory_space<vmem>>, vector<1x128xf32>
    %4 = vector.broadcast %3 : vector<1x128xf32> to vector<512x128xf32>
    %5 = arith.addf %2, %4 : vector<512x128xf32>
    %cst_5 = arith.constant 0.000000e+00 : f32
    %6 = vector.broadcast %cst_5 : f32 to vector<512x128xf32>
    %7 = arith.maximumf %5, %6 : vector<512x128xf32>
    %8 = arith.truncf %7 : vector<512x128xf32> to vector<512x128xbf16>
    %c0_6 = arith.constant 0 : index
    %c0_7 = arith.constant 0 : index
    %9 = vector.load %arg5[%c0_6, %c0_7] : memref<512x128xbf16, #tpu.memory_space<vmem>>, vector<512x128xbf16>
    tpu.vector_store %arg5[%c0_6, %c0_7], %8 {strides = array<i32>} : memref<512x128xbf16, #tpu.memory_space<vmem>>, vector<512x128xbf16>,
    return
  }
  func.func @transform_0(%arg0: i32, %arg1: i32) -> (i32, i32) {
    %c0_i32 = arith.constant 0 : i32
    %c0_i32_0 = arith.constant 0 : i32
    return %arg0, %c0_i32 : i32, i32
  }
  func.func @transform_1(%arg0: i32, %arg1: i32) -> (i32, i32) {
    %c0_i32 = arith.constant 0 : i32
    %c0_i32_0 = arith.constant 0 : i32
    return %c0_i32, %arg1 : i32, i32
  }
  func.func @transform_2(%arg0: i32, %arg1: i32) -> (i32, i32) {
    %c0_i32 = arith.constant 0 : i32
    %c0_i32_0 = arith.constant 0 : i32
    return %c0_i32, %arg1 : i32, i32
  }
  func.func @transform_3(%arg0: i32, %arg1: i32) -> (i32, i32) {
    %c0_i32 = arith.constant 0 : i32
    return %arg0, %arg1 : i32, i32
  }
}

</mosaic_0001>

<llo_original>
// kernel: conv_bn.1
$region0: #{conv_bn.1}
  #allocation0 [shape = 'u32[]', space=smem, size = 0x4, offset = 0x4, fixed_abs, tag = 'smem constant byte address 0x4 - core index']
  #allocation1 [shape = 'u32[144,128]{1,0:T(1,128)}', space=vmem, size = 0x12000, scoped, tag = 'internal scratch']
  %s0 = inlined_call_operand.vmem [shape: bf16[512,160], index: 0, kind: input, shape index: {}]
  %s1 = inlined_call_operand.vmem [shape: bf16[160,128], index: 1, kind: input, shape index: {}]
  %s2 = inlined_call_operand.vmem [shape: f32[1,128], index: 2, kind: input, shape index: {}]
  %s3 = inlined_call_operand.hbm [shape: bf16[512,128], index: 3, kind: output, shape index: {}]
  %s4 = sld [smem:[#allocation0]]
  $region22: #{conv_bn.1} parent=0
    _
  %s6 = ssub.s32 1, %s4
  %s7 = scalar_select 0, %s6, %s4
  $region1: #{conv_bn.1} parent=0
    #allocation2 [shape = 'u8[131072]{0}', space=vmem, size = 0x20000, scoped, tag = 'output window, operand 0, single buffered']
    #allocation3 [shape = 's32[1]{0}', space=sflag, size = 0x4, scoped, tag = 'scoped memory for conv_bn.1']
    %8 = vsyncpa [#allocation3], 0
    // Predicated region
    $region2: #{conv_bn.1} parent=1 // pred_check
      _
    $region3: #{conv_bn.1} parent=1 // pred_check_branch
      %10 = sbr.rel (0) target = $region5
    $region4: #{conv_bn.1} parent=1 // pred_region
      _
    $region5: #{conv_bn.1} parent=1 // pred_fallthru
      _
    // Predicated region
    $region6: #{conv_bn.1} parent=1 // pred_check
      _
    $region7: #{conv_bn.1} parent=1 // pred_check_branch
      %12 = sbr.rel (0) target = $region9
    $region8: #{conv_bn.1} parent=1 // pred_region
      _
    $region9: #{conv_bn.1} parent=1 // pred_fallthru
      _
    // Predicated region
    $region10: #{conv_bn.1} parent=1 // pred_check
      _
    $region11: #{conv_bn.1} parent=1 // pred_check_branch
      %14 = sbr.rel (0) target = $region13
    $region12: #{conv_bn.1} parent=1 // pred_region
      _
    $region13: #{conv_bn.1} parent=1 // pred_fallthru
      _
    %v16 = vld [vmem:[%s0] sm:$0xff]
    %v17 = vld [vmem:[%s0 + $0x8] sm:$0xff]
    %v18 = vld [vmem:[%s0 + $0x10] sm:$0xff]
    %v19 = vld [vmem:[%s0 + $0x18] sm:$0xff]
    %v20 = vld [vmem:[%s0 + $0x20] sm:$0xff]
    %v21 = vld [vmem:[%s0 + $0x28] sm:$0xff]
    %v22 = vld [vmem:[%s0 + $0x30] sm:$0xff]
    %v23 = vld [vmem:[%s0 + $0x38] sm:$0xff]
    %v24 = vld [vmem:[%s0 + $0x40] sm:$0xff]
    %v25 = vld [vmem:[%s0 + $0x48] sm:$0xff]
    %v26 = vld [vmem:[%s0 + $0x50] sm:$0xff]
    %v27 = vld [vmem:[%s0 + $0x58] sm:$0xff]
    %v28 = vld [vmem:[%s0 + $0x60] sm:$0xff]
    %v29 = vld [vmem:[%s0 + $0x68] sm:$0xff]
    %v30 = vld [vmem:[%s0 + $0x70] sm:$0xff]
    %v31 = vld [vmem:[%s0 + $0x78] sm:$0xff]
    %v32 = vld [vmem:[%s0 + $0x80] sm:$0xff]
    %v33 = vld [vmem:[%s0 + $0x88] sm:$0xff]
    %v34 = vld [vmem:[%s0 + $0x90] sm:$0xff]
    %v35 = vld [vmem:[%s0 + $0x98] sm:$0xff]
    %v36 = vld [vmem:[%s0 + $0xa0] sm:$0xff]
    %v37 = vld [vmem:[%s0 + $0xa8] sm:$0xff]
    %v38 = vld [vmem:[%s0 + $0xb0] sm:$0xff]
    %v39 = vld [vmem:[%s0 + $0xb8] sm:$0xff]
    %v40 = vld [vmem:[%s0 + $0xc0] sm:$0xff]
    %v41 = vld [vmem:[%s0 + $0xc8] sm:$0xff]
    %v42 = vld [vmem:[%s0 + $0xd0] sm:$0xff]
    %v43 = vld [vmem:[%s0 + $0xd8] sm:$0xff]
    %v44 = vld [vmem:[%s0 + $0xe0] sm:$0xff]
    %v45 = vld [vmem:[%s0 + $0xe8] sm:$0xff]
    %v46 = vld [vmem:[%s0 + $0xf0] sm:$0xff]
    %v47 = vld [vmem:[%s0 + $0xf8] sm:$0xff]
    %v48 = vld [vmem:[%s0 + $0x100] sm:$0xff]
    %v49 = vld [vmem:[%s0 + $0x108] sm:$0xff]
    %v50 = vld [vmem:[%s0 + $0x110] sm:$0xff]
    %v51 = vld [vmem:[%s0 + $0x118] sm:$0xff]
    %v52 = vld [vmem:[%s0 + $0x120] sm:$0xff]
    %v53 = vld [vmem:[%s0 + $0x128] sm:$0xff]
    %v54 = vld [vmem:[%s0 + $0x130] sm:$0xff]
    %v55 = vld [vmem:[%s0 + $0x138] sm:$0xff]
    %v56 = vld [vmem:[%s0 + $0x140] sm:$0xff]
    %v57 = vld [vmem:[%s0 + $0x148] sm:$0xff]
    %v58 = vld [vmem:[%s0 + $0x150] sm:$0xff]
    %v59 = vld [vmem:[%s0 + $0x158] sm:$0xff]
    %v60 = vld [vmem:[%s0 + $0x160] sm:$0xff]
    %v61 = vld [vmem:[%s0 + $0x168] sm:$0xff]
    %v62 = vld [vmem:[%s0 + $0x170] sm:$0xff]
    %v63 = vld [vmem:[%s0 + $0x178] sm:$0xff]
    %v64 = vld [vmem:[%s0 + $0x180] sm:$0xff]
    %v65 = vld [vmem:[%s0 + $0x188] sm:$0xff]
    %v66 = vld [vmem:[%s0 + $0x190] sm:$0xff]
    %v67 = vld [vmem:[%s0 + $0x198] sm:$0xff]
    %v68 = vld [vmem:[%s0 + $0x1a0] sm:$0xff]
    %v69 = vld [vmem:[%s0 + $0x1a8] sm:$0xff]
    %v70 = vld [vmem:[%s0 + $0x1b0] sm:$0xff]
    %v71 = vld [vmem:[%s0 + $0x1b8] sm:$0xff]
    %v72 = vld [vmem:[%s0 + $0x1c0] sm:$0xff]
    %v73 = vld [vmem:[%s0 + $0x1c8] sm:$0xff]
    %v74 = vld [vmem:[%s0 + $0x1d0] sm:$0xff]
    %v75 = vld [vmem:[%s0 + $0x1d8] sm:$0xff]
    %v76 = vld [vmem:[%s0 + $0x1e0] sm:$0xff]
    %v77 = vld [vmem:[%s0 + $0x1e8] sm:$0xff]
    %v78 = vld [vmem:[%s0 + $0x1f0] sm:$0xff]
    %v79 = vld [vmem:[%s0 + $0x1f8] sm:$0xff]
    %v80 = vld [vmem:[%s1] sm:$0xf]
    %v81 = vld [vmem:[%s1 + $0x4] sm:$0xf]
    %v82 = vld [vmem:[%s1 + $0x8] sm:$0xf]
    %v83 = vld [vmem:[%s1 + $0xc] sm:$0xf]
    %v84 = vld [vmem:[%s1 + $0x10] sm:$0xf]
    %v85 = vld [vmem:[%s1 + $0x14] sm:$0xf]
    %v86 = vld [vmem:[%s1 + $0x18] sm:$0xf]
    %v87 = vld [vmem:[%s1 + $0x1c] sm:$0xf]
    %v88 = vld [vmem:[%s1 + $0x20] sm:$0xf]
    %v89 = vld [vmem:[%s1 + $0x24] sm:$0xf]
    %v90 = vld [vmem:[%s1 + $0x28] sm:$0xf]
    %v91 = vld [vmem:[%s1 + $0x2c] sm:$0xf]
    %v92 = vld [vmem:[%s1 + $0x30] sm:$0xf]
    %v93 = vld [vmem:[%s1 + $0x34] sm:$0xf]
    %v94 = vld [vmem:[%s1 + $0x38] sm:$0xf]
    %v95 = vld [vmem:[%s1 + $0x3c] sm:$0xf]
    %v96 = vld [vmem:[%s1 + $0x40] sm:$0xf]
    %v97 = vld [vmem:[%s1 + $0x44] sm:$0xf]
    %v98 = vld [vmem:[%s1 + $0x48] sm:$0xf]
    %v99 = vld [vmem:[%s1 + $0x4c] sm:$0xf]
    %v100 = vld [vmem:[%s2] sm:$0x1]
    %v102 = vlaneseq
    %v103 = vshrl.u32 %v102, 7
    %v104 = vsub.s32 0, %v103
    %v105 = vrot.slane %v100, %v104
    %v171 = vunpack.c.l.b16 %v16
    %v172 = vunpack.c.h.b16 %v16
    %v173 = vunpack.c.l.b16 %v17
    %v174 = vunpack.c.h.b16 %v17
    %v175 = vunpack.c.l.b16 %v18
    %v176 = vunpack.c.h.b16 %v18
    %v177 = vunpack.c.l.b16 %v19
    %v178 = vunpack.c.h.b16 %v19
    %v179 = vunpack.c.l.b16 %v20
    %v180 = vunpack.c.h.b16 %v20
    %v181 = vunpack.c.l.b16 %v21
    %v182 = vunpack.c.h.b16 %v21
    %v183 = vunpack.c.l.b16 %v22
    %v184 = vunpack.c.h.b16 %v22
    %v185 = vunpack.c.l.b16 %v23
    %v186 = vunpack.c.h.b16 %v23
    %v187 = vunpack.c.l.b16 %v24
    %v188 = vunpack.c.h.b16 %v24
    %v189 = vunpack.c.l.b16 %v25
    %v190 = vunpack.c.h.b16 %v25
    %v191 = vunpack.c.l.b16 %v26
    %v192 = vunpack.c.h.b16 %v26
    %v193 = vunpack.c.l.b16 %v27
    %v194 = vunpack.c.h.b16 %v27
    %v195 = vunpack.c.l.b16 %v28
    %v196 = vunpack.c.h.b16 %v28
    %v197 = vunpack.c.l.b16 %v29
    %v198 = vunpack.c.h.b16 %v29
    %v199 = vunpack.c.l.b16 %v30
    %v200 = vunpack.c.h.b16 %v30
    %v201 = vunpack.c.l.b16 %v31
    %v202 = vunpack.c.h.b16 %v31
    %v203 = vunpack.c.l.b16 %v32
    %v204 = vunpack.c.h.b16 %v32
    %v205 = vunpack.c.l.b16 %v33
    %v206 = vunpack.c.h.b16 %v33
    %v207 = vunpack.c.l.b16 %v34
    %v208 = vunpack.c.h.b16 %v34
    %v209 = vunpack.c.l.b16 %v35
    %v210 = vunpack.c.h.b16 %v35
    %v211 = vunpack.c.l.b16 %v36
    %v212 = vunpack.c.h.b16 %v36
    %v213 = vunpack.c.l.b16 %v37
    %v214 = vunpack.c.h.b16 %v37
    %v215 = vunpack.c.l.b16 %v38
    %v216 = vunpack.c.h.b16 %v38
    %v217 = vunpack.c.l.b16 %v39
    %v218 = vunpack.c.h.b16 %v39
    %v219 = vunpack.c.l.b16 %v40
    %v220 = vunpack.c.h.b16 %v40
    %v221 = vunpack.c.l.b16 %v41
    %v222 = vunpack.c.h.b16 %v41
    %v223 = vunpack.c.l.b16 %v42
    %v224 = vunpack.c.h.b16 %v42
    %v225 = vunpack.c.l.b16 %v43
    %v226 = vunpack.c.h.b16 %v43
    %v227 = vunpack.c.l.b16 %v44
    %v228 = vunpack.c.h.b16 %v44
    %v229 = vunpack.c.l.b16 %v45
    %v230 = vunpack.c.h.b16 %v45
    %v231 = vunpack.c.l.b16 %v46
    %v232 = vunpack.c.h.b16 %v46
    %v233 = vunpack.c.l.b16 %v47
    %v234 = vunpack.c.h.b16 %v47
    %v235 = vunpack.c.l.b16 %v48
    %v236 = vunpack.c.h.b16 %v48
    %v237 = vunpack.c.l.b16 %v49
    %v238 = vunpack.c.h.b16 %v49
    %v239 = vunpack.c.l.b16 %v50
    %v240 = vunpack.c.h.b16 %v50
    %v241 = vunpack.c.l.b16 %v51
    %v242 = vunpack.c.h.b16 %v51
    %v243 = vunpack.c.l.b16 %v52
    %v244 = vunpack.c.h.b16 %v52
    %v245 = vunpack.c.l.b16 %v53
    %v246 = vunpack.c.h.b16 %v53
    %v247 = vunpack.c.l.b16 %v54
    %v248 = vunpack.c.h.b16 %v54
    %v249 = vunpack.c.l.b16 %v55
    %v250 = vunpack.c.h.b16 %v55
    %v251 = vunpack.c.l.b16 %v56
    %v252 = vunpack.c.h.b16 %v56
    %v253 = vunpack.c.l.b16 %v57
    %v254 = vunpack.c.h.b16 %v57
    %v255 = vunpack.c.l.b16 %v58
    %v256 = vunpack.c.h.b16 %v58
    %v257 = vunpack.c.l.b16 %v59
    %v258 = vunpack.c.h.b16 %v59
    %v259 = vunpack.c.l.b16 %v60
    %v260 = vunpack.c.h.b16 %v60
    %v261 = vunpack.c.l.b16 %v61
    %v262 = vunpack.c.h.b16 %v61
    %v263 = vunpack.c.l.b16 %v62
    %v264 = vunpack.c.h.b16 %v62
    %v265 = vunpack.c.l.b16 %v63
    %v266 = vunpack.c.h.b16 %v63
    %v267 = vunpack.c.l.b16 %v64
    %v268 = vunpack.c.h.b16 %v64
    %v269 = vunpack.c.l.b16 %v65
    %v270 = vunpack.c.h.b16 %v65
    %v271 = vunpack.c.l.b16 %v66
    %v272 = vunpack.c.h.b16 %v66
    %v273 = vunpack.c.l.b16 %v67
    %v274 = vunpack.c.h.b16 %v67
    %v275 = vunpack.c.l.b16 %v68
    %v276 = vunpack.c.h.b16 %v68
    %v277 = vunpack.c.l.b16 %v69
    %v278 = vunpack.c.h.b16 %v69
    %v279 = vunpack.c.l.b16 %v70
    %v280 = vunpack.c.h.b16 %v70
    %v281 = vunpack.c.l.b16 %v71
    %v282 = vunpack.c.h.b16 %v71
    %v283 = vunpack.c.l.b16 %v72
    %v284 = vunpack.c.h.b16 %v72
    %v285 = vunpack.c.l.b16 %v73
    %v286 = vunpack.c.h.b16 %v73
    %v287 = vunpack.c.l.b16 %v74
    %v288 = vunpack.c.h.b16 %v74
    %v289 = vunpack.c.l.b16 %v75
    %v290 = vunpack.c.h.b16 %v75
    %v291 = vunpack.c.l.b16 %v76
    %v292 = vunpack.c.h.b16 %v76
    %v293 = vunpack.c.l.b16 %v77
    %v294 = vunpack.c.h.b16 %v77
    %v295 = vunpack.c.l.b16 %v78
    %v296 = vunpack.c.h.b16 %v78
    %v297 = vunpack.c.l.b16 %v79
    %v298 = vunpack.c.h.b16 %v79
    %v299 = vpack.c.b16 %v173, %v171
    %v300 = vpack.c.b16 %v174, %v172
    %v301 = vpack.c.b16 %v177, %v175
    %v302 = vpack.c.b16 %v178, %v176
    %v303 = vpack.c.b16 %v181, %v179
    %v304 = vpack.c.b16 %v182, %v180
    %v305 = vpack.c.b16 %v185, %v183
    %v306 = vpack.c.b16 %v186, %v184
    %v307 = vpack.c.b16 %v189, %v187
    %v308 = vpack.c.b16 %v190, %v188
    %v309 = vpack.c.b16 %v193, %v191
    %v310 = vpack.c.b16 %v194, %v192
    %v311 = vpack.c.b16 %v197, %v195
    %v312 = vpack.c.b16 %v198, %v196
    %v313 = vpack.c.b16 %v201, %v199
    %v314 = vpack.c.b16 %v202, %v200
    %v315 = vpack.c.b16 %v205, %v203
    %v316 = vpack.c.b16 %v206, %v204
    %v317 = vpack.c.b16 %v209, %v207
    %v318 = vpack.c.b16 %v210, %v208
    %v319 = vpack.c.b16 %v213, %v211
    %v320 = vpack.c.b16 %v214, %v212
    %v321 = vpack.c.b16 %v217, %v215
    %v322 = vpack.c.b16 %v218, %v216
    %v323 = vpack.c.b16 %v221, %v219
    %v324 = vpack.c.b16 %v222, %v220
    %v325 = vpack.c.b16 %v225, %v223
    %v326 = vpack.c.b16 %v226, %v224
    %v327 = vpack.c.b16 %v229, %v227
    %v328 = vpack.c.b16 %v230, %v228
    %v329 = vpack.c.b16 %v233, %v231
    %v330 = vpack.c.b16 %v234, %v232
    %v331 = vpack.c.b16 %v237, %v235
    %v332 = vpack.c.b16 %v238, %v236
    %v333 = vpack.c.b16 %v241, %v239
    %v334 = vpack.c.b16 %v242, %v240
    %v335 = vpack.c.b16 %v245, %v243
    %v336 = vpack.c.b16 %v246, %v244
    %v337 = vpack.c.b16 %v249, %v247
    %v338 = vpack.c.b16 %v250, %v248
    %v339 = vpack.c.b16 %v253, %v251
    %v340 = vpack.c.b16 %v254, %v252
    %v341 = vpack.c.b16 %v257, %v255
    %v342 = vpack.c.b16 %v258, %v256
    %v343 = vpack.c.b16 %v261, %v259
    %v344 = vpack.c.b16 %v262, %v260
    %v345 = vpack.c.b16 %v265, %v263
    %v346 = vpack.c.b16 %v266, %v264
    %v347 = vpack.c.b16 %v269, %v267
    %v348 = vpack.c.b16 %v270, %v268
    %v349 = vpack.c.b16 %v273, %v271
    %v350 = vpack.c.b16 %v274, %v272
    %v351 = vpack.c.b16 %v277, %v275
    %v352 = vpack.c.b16 %v278, %v276
    %v353 = vpack.c.b16 %v281, %v279
    %v354 = vpack.c.b16 %v282, %v280
    %v355 = vpack.c.b16 %v285, %v283
    %v356 = vpack.c.b16 %v286, %v284
    %v357 = vpack.c.b16 %v289, %v287
    %v358 = vpack.c.b16 %v290, %v288
    %v359 = vpack.c.b16 %v293, %v291
    %v360 = vpack.c.b16 %v294, %v292
    %v361 = vpack.c.b16 %v297, %v295
    %v362 = vpack.c.b16 %v298, %v296
    %v415 = vunpack.c.l.b16 %v80
    %v416 = vunpack.c.l.b16 %v81
    %v417 = vunpack.c.l.b16 %v82
    %v418 = vunpack.c.l.b16 %v83
    %v419 = vunpack.c.l.b16 %v84
    %v420 = vunpack.c.l.b16 %v85
    %v421 = vunpack.c.l.b16 %v86
    %v422 = vunpack.c.l.b16 %v87
    %v423 = vunpack.c.l.b16 %v88
    %v424 = vunpack.c.l.b16 %v89
    %v425 = vunpack.c.l.b16 %v90
    %v426 = vunpack.c.l.b16 %v91
    %v427 = vunpack.c.l.b16 %v92
    %v428 = vunpack.c.l.b16 %v93
    %v429 = vunpack.c.l.b16 %v94
    %v430 = vunpack.c.l.b16 %v95
    %v431 = vunpack.c.l.b16 %v96
    %v432 = vunpack.c.l.b16 %v97
    %v433 = vunpack.c.l.b16 %v98
    %v434 = vunpack.c.l.b16 %v99
    %v435 = vpack.c.b16 %v416, %v415
    %v436 = vpack.c.b16 %v418, %v417
    %v437 = vpack.c.b16 %v420, %v419
    %v438 = vpack.c.b16 %v422, %v421
    %v439 = vpack.c.b16 %v424, %v423
    %v440 = vpack.c.b16 %v426, %v425
    %v441 = vpack.c.b16 %v428, %v427
    %v442 = vpack.c.b16 %v430, %v429
    %v443 = vpack.c.b16 %v432, %v431
    %v444 = vpack.c.b16 %v434, %v433
    %vm455 = vcmask 261120
    %v457 = vsel %vm455, %v300, 0
    %v460 = vsel %vm455, %v302, 0
    %v463 = vsel %vm455, %v304, 0
    %v466 = vsel %vm455, %v306, 0
    %v469 = vsel %vm455, %v308, 0
    %v472 = vsel %vm455, %v310, 0
    %v475 = vsel %vm455, %v312, 0
    %v478 = vsel %vm455, %v314, 0
    %v481 = vsel %vm455, %v316, 0
    %v484 = vsel %vm455, %v318, 0
    %v487 = vsel %vm455, %v320, 0
    %v490 = vsel %vm455, %v322, 0
    %v493 = vsel %vm455, %v324, 0
    %v496 = vsel %vm455, %v326, 0
    %v499 = vsel %vm455, %v328, 0
    %v502 = vsel %vm455, %v330, 0
    %v505 = vsel %vm455, %v332, 0
    %v508 = vsel %vm455, %v334, 0
    %v511 = vsel %vm455, %v336, 0
    %v514 = vsel %vm455, %v338, 0
    %v517 = vsel %vm455, %v340, 0
    %v520 = vsel %vm455, %v342, 0
    %v523 = vsel %vm455, %v344, 0
    %v526 = vsel %vm455, %v346, 0
    %v529 = vsel %vm455, %v348, 0
    %v532 = vsel %vm455, %v350, 0
    %v535 = vsel %vm455, %v352, 0
    %v538 = vsel %vm455, %v354, 0
    %v541 = vsel %vm455, %v356, 0
    %v544 = vsel %vm455, %v358, 0
    %v547 = vsel %vm455, %v360, 0
    %v550 = vsel %vm455, %v362, 0
    %552 = vmatprep.subr.bf16.mxu0 0
    %553 = vmatpush1.bf16.msra.mxu0 %v435
    %554 = vmatprep.subr.bf16.mxu0 0
    %555 = vmatpush1.bf16.msra.mxu0 %v436
    %556 = vmatprep.subr.bf16.mxu0 0
    %557 = vmatpush1.bf16.msra.mxu0 %v437
    %558 = vmatprep.subr.bf16.mxu0 0
    %559 = vmatpush1.bf16.msra.mxu0 %v438
    %560 = vmatprep.subr.bf16.mxu0 0
    %561 = vmatpush1.bf16.msra.mxu0 %v439
    %562 = vmatprep.subr.bf16.mxu0 0
    %563 = vmatpush1.bf16.msra.mxu0 %v440
    %564 = vmatprep.subr.bf16.mxu0 0
    %565 = vmatpush1.bf16.msra.mxu0 %v441
    %566 = vmatprep.subr.bf16.mxu0 0
    %567 = vmatpush1.bf16.msra.mxu0 %v442
    %568 = vmatprep.subr.bf16.mxu0 0
    %569 = vmatpush1.bf16.msra.mxu0 %v443
    %570 = vmatprep.subr.bf16.mxu0 0
    %571 = vmatpush1.bf16.msra.mxu0 %v444
    %572 = vmatprep.subr.bf16.mxu0 0
    %573 = vmatpush1.bf16.msra.mxu0 0
    %574 = vmatprep.subr.bf16.mxu0 0
    %575 = vmatpush1.bf16.msra.mxu0 0
    %576 = vmatprep.subr.bf16.mxu0 0
    %577 = vmatpush1.bf16.msra.mxu0 0
    %578 = vmatprep.subr.bf16.mxu0 0
    %579 = vmatpush1.bf16.msra.mxu0 0
    %580 = vmatprep.subr.bf16.mxu0 0
    %581 = vmatpush1.bf16.msra.mxu0 0
    %582 = vmatprep.subr.bf16.mxu0 0
    %583 = vmatpush1.bf16.msra.mxu0 0
    %584 = vmatprep.mubr.bf16.mxu0 %v457
    %585 = vmatmul.mubr.bf16.gmra.mrb[0].mxu0 %v299
    %v586 = vpop.f32.mrb[0].mxu0
    %v587 = vadd.f32 %v105, %v586
    %v588 = vpop.f32.mrb[0].mxu0
    %v589 = vpop.f32.mrb[0].mxu0
    %v590 = vadd.f32 %v105, %v589
    %v591 = vpop.f32.mrb[0].mxu0
    %592 = vmatprep.mubr.bf16.mxu0 %v460
    %593 = vmatmul.mubr.bf16.gmra.mrb[0].mxu0 %v301
    %v594 = vpop.f32.mrb[0].mxu0
    %v595 = vadd.f32 %v105, %v594
    %v596 = vpop.f32.mrb[0].mxu0
    %v597 = vpop.f32.mrb[0].mxu0
    %v598 = vadd.f32 %v105, %v597
    %v599 = vpop.f32.mrb[0].mxu0
    %600 = vmatprep.mubr.bf16.mxu0 %v463
    %601 = vmatmul.mubr.bf16.gmra.mrb[0].mxu0 %v303
    %v602 = vpop.f32.mrb[0].mxu0
    %v603 = vadd.f32 %v105, %v602
    %v604 = vpop.f32.mrb[0].mxu0
    %v605 = vpop.f32.mrb[0].mxu0
    %v606 = vadd.f32 %v105, %v605
    %v607 = vpop.f32.mrb[0].mxu0
    %608 = vmatprep.mubr.bf16.mxu0 %v466
    %609 = vmatmul.mubr.bf16.gmra.mrb[0].mxu0 %v305
    %v610 = vpop.f32.mrb[0].mxu0
    %v611 = vadd.f32 %v105, %v610
    %v612 = vpop.f32.mrb[0].mxu0
    %v613 = vpop.f32.mrb[0].mxu0
    %v614 = vadd.f32 %v105, %v613
    %v615 = vpop.f32.mrb[0].mxu0
    %616 = vmatprep.mubr.bf16.mxu0 %v469
    %617 = vmatmul.mubr.bf16.gmra.mrb[0].mxu0 %v307
    %v618 = vpop.f32.mrb[0].mxu0
    %v619 = vadd.f32 %v105, %v618
    %v620 = vpop.f32.mrb[0].mxu0
    %v621 = vpop.f32.mrb[0].mxu0
    %v622 = vadd.f32 %v105, %v621
    %v623 = vpop.f32.mrb[0].mxu0
    %624 = vmatprep.mubr.bf16.mxu0 %v472
    %625 = vmatmul.mubr.bf16.gmra.mrb[0].mxu0 %v309
    %v626 = vpop.f32.mrb[0].mxu0
    %v627 = vadd.f32 %v105, %v626
    %v628 = vpop.f32.mrb[0].mxu0
    %v629 = vpop.f32.mrb[0].mxu0
    %v630 = vadd.f32 %v105, %v629
    %v631 = vpop.f32.mrb[0].mxu0
    %632 = vmatprep.mubr.bf16.mxu0 %v475
    %633 = vmatmul.mubr.bf16.gmra.mrb[0].mxu0 %v311
    %v634 = vpop.f32.mrb[0].mxu0
    %v635 = vadd.f32 %v105, %v634
    %v636 = vpop.f32.mrb[0].mxu0
    %v637 = vpop.f32.mrb[0].mxu0
    %v638 = vadd.f32 %v105, %v637
    %v639 = vpop.f32.mrb[0].mxu0
    %640 = vmatprep.mubr.bf16.mxu0 %v478
    %641 = vmatmul.mubr.bf16.gmra.mrb[0].mxu0 %v313
    %v642 = vpop.f32.mrb[0].mxu0
    %v643 = vadd.f32 %v105, %v642
    %v644 = vpop.f32.mrb[0].mxu0
    %v645 = vpop.f32.mrb[0].mxu0
    %v646 = vadd.f32 %v105, %v645
    %v647 = vpop.f32.mrb[0].mxu0
    %648 = vmatprep.mubr.bf16.mxu0 %v481
    %649 = vmatmul.mubr.bf16.gmra.mrb[0].mxu0 %v315
    %v650 = vpop.f32.mrb[0].mxu0
    %v651 = vadd.f32 %v105, %v650
    %v652 = vpop.f32.mrb[0].mxu0
    %v653 = vpop.f32.mrb[0].mxu0
    %v654 = vadd.f32 %v105, %v653
    %v655 = vpop.f32.mrb[0].mxu0
    %656 = vmatprep.mubr.bf16.mxu0 %v484
    %657 = vmatmul.mubr.bf16.gmra.mrb[0].mxu0 %v317
    %v658 = vpop.f32.mrb[0].mxu0
    %v659 = vadd.f32 %v105, %v658
    %v660 = vpop.f32.mrb[0].mxu0
    %v661 = vpop.f32.mrb[0].mxu0
    %v662 = vadd.f32 %v105, %v661
    %v663 = vpop.f32.mrb[0].mxu0
    %664 = vmatprep.mubr.bf16.mxu0 %v487
    %665 = vmatmul.mubr.bf16.gmra.mrb[0].mxu0 %v319
    %v666 = vpop.f32.mrb[0].mxu0
    %v667 = vadd.f32 %v105, %v666
    %v668 = vpop.f32.mrb[0].mxu0
    %v669 = vpop.f32.mrb[0].mxu0
    %v670 = vadd.f32 %v105, %v669
    %v671 = vpop.f32.mrb[0].mxu0
    %672 = vmatprep.mubr.bf16.mxu0 %v490
    %673 = vmatmul.mubr.bf16.gmra.mrb[0].mxu0 %v321
    %v674 = vpop.f32.mrb[0].mxu0
    %v675 = vadd.f32 %v105, %v674
    %v676 = vpop.f32.mrb[0].mxu0
    %v677 = vpop.f32.mrb[0].mxu0
    %v678 = vadd.f32 %v105, %v677
    %v679 = vpop.f32.mrb[0].mxu0
    %680 = vmatprep.mubr.bf16.mxu0 %v493
    %681 = vmatmul.mubr.bf16.gmra.mrb[0].mxu0 %v323
    %v682 = vpop.f32.mrb[0].mxu0
    %v683 = vadd.f32 %v105, %v682
    %v684 = vpop.f32.mrb[0].mxu0
    %v685 = vpop.f32.mrb[0].mxu0
    %v686 = vadd.f32 %v105, %v685
    %v687 = vpop.f32.mrb[0].mxu0
    %688 = vmatprep.mubr.bf16.mxu0 %v496
    %689 = vmatmul.mubr.bf16.gmra.mrb[0].mxu0 %v325
    %v690 = vpop.f32.mrb[0].mxu0
    %v691 = vadd.f32 %v105, %v690
    %v692 = vpop.f32.mrb[0].mxu0
    %v693 = vpop.f32.mrb[0].mxu0
    %v694 = vadd.f32 %v105, %v693
    %v695 = vpop.f32.mrb[0].mxu0
    %696 = vmatprep.mubr.bf16.mxu0 %v499
    %697 = vmatmul.mubr.bf16.gmra.mrb[0].mxu0 %v327
    %v698 = vpop.f32.mrb[0].mxu0
    %v699 = vadd.f32 %v105, %v698
    %v700 = vpop.f32.mrb[0].mxu0
    %v701 = vpop.f32.mrb[0].mxu0
    %v702 = vadd.f32 %v105, %v701
    %v703 = vpop.f32.mrb[0].mxu0
    %704 = vmatprep.mubr.bf16.mxu0 %v502
    %705 = vmatmul.mubr.bf16.gmra.mrb[0].mxu0 %v329
    %v706 = vpop.f32.mrb[0].mxu0
    %v707 = vadd.f32 %v105, %v706
    %v708 = vpop.f32.mrb[0].mxu0
    %v709 = vpop.f32.mrb[0].mxu0
    %v710 = vadd.f32 %v105, %v709
    %v711 = vpop.f32.mrb[0].mxu0
    %712 = vmatprep.mubr.bf16.mxu0 %v505
    %713 = vmatmul.mubr.bf16.gmra.mrb[0].mxu0 %v331
    %v714 = vpop.f32.mrb[0].mxu0
    %v715 = vadd.f32 %v105, %v714
    %v716 = vpop.f32.mrb[0].mxu0
    %v717 = vpop.f32.mrb[0].mxu0
    %v718 = vadd.f32 %v105, %v717
    %v719 = vpop.f32.mrb[0].mxu0
    %720 = vmatprep.mubr.bf16.mxu0 %v508
    %721 = vmatmul.mubr.bf16.gmra.mrb[0].mxu0 %v333
    %v722 = vpop.f32.mrb[0].mxu0
    %v723 = vadd.f32 %v105, %v722
    %v724 = vpop.f32.mrb[0].mxu0
    %v725 = vpop.f32.mrb[0].mxu0
    %v726 = vadd.f32 %v105, %v725
    %v727 = vpop.f32.mrb[0].mxu0
    %728 = vmatprep.mubr.bf16.mxu0 %v511
    %729 = vmatmul.mubr.bf16.gmra.mrb[0].mxu0 %v335
    %v730 = vpop.f32.mrb[0].mxu0
    %v731 = vadd.f32 %v105, %v730
    %v732 = vpop.f32.mrb[0].mxu0
    %v733 = vpop.f32.mrb[0].mxu0
    %v734 = vadd.f32 %v105, %v733
    %v735 = vpop.f32.mrb[0].mxu0
    %736 = vmatprep.mubr.bf16.mxu0 %v514
    %737 = vmatmul.mubr.bf16.gmra.mrb[0].mxu0 %v337
    %v738 = vpop.f32.mrb[0].mxu0
    %v739 = vadd.f32 %v105, %v738
    %v740 = vpop.f32.mrb[0].mxu0
    %v741 = vpop.f32.mrb[0].mxu0
    %v742 = vadd.f32 %v105, %v741
    %v743 = vpop.f32.mrb[0].mxu0
    %744 = vmatprep.mubr.bf16.mxu0 %v517
    %745 = vmatmul.mubr.bf16.gmra.mrb[0].mxu0 %v339
    %v746 = vpop.f32.mrb[0].mxu0
    %v747 = vadd.f32 %v105, %v746
    %v748 = vpop.f32.mrb[0].mxu0
    %v749 = vpop.f32.mrb[0].mxu0
    %v750 = vadd.f32 %v105, %v749
    %v751 = vpop.f32.mrb[0].mxu0
    %752 = vmatprep.mubr.bf16.mxu0 %v520
    %753 = vmatmul.mubr.bf16.gmra.mrb[0].mxu0 %v341
    %v754 = vpop.f32.mrb[0].mxu0
    %v755 = vadd.f32 %v105, %v754
    %v756 = vpop.f32.mrb[0].mxu0
    %v757 = vpop.f32.mrb[0].mxu0
    %v758 = vadd.f32 %v105, %v757
    %v759 = vpop.f32.mrb[0].mxu0
    %760 = vmatprep.mubr.bf16.mxu0 %v523
    %761 = vmatmul.mubr.bf16.gmra.mrb[0].mxu0 %v343
    %v762 = vpop.f32.mrb[0].mxu0
    %v763 = vadd.f32 %v105, %v762
    %v764 = vpop.f32.mrb[0].mxu0
    %v765 = vpop.f32.mrb[0].mxu0
    %v766 = vadd.f32 %v105, %v765
    %v767 = vpop.f32.mrb[0].mxu0
    %768 = vmatprep.mubr.bf16.mxu0 %v526
    %769 = vmatmul.mubr.bf16.gmra.mrb[0].mxu0 %v345
    %v770 = vpop.f32.mrb[0].mxu0
    %v771 = vadd.f32 %v105, %v770
    %v772 = vpop.f32.mrb[0].mxu0
    %v773 = vpop.f32.mrb[0].mxu0
    %v774 = vadd.f32 %v105, %v773
    %v775 = vpop.f32.mrb[0].mxu0
    %776 = vmatprep.mubr.bf16.mxu0 %v529
    %777 = vmatmul.mubr.bf16.gmra.mrb[0].mxu0 %v347
    %v778 = vpop.f32.mrb[0].mxu0
    %v779 = vadd.f32 %v105, %v778
    %v780 = vpop.f32.mrb[0].mxu0
    %v781 = vpop.f32.mrb[0].mxu0
    %v782 = vadd.f32 %v105, %v781
    %v783 = vpop.f32.mrb[0].mxu0
    %784 = vmatprep.mubr.bf16.mxu0 %v532
    %785 = vmatmul.mubr.bf16.gmra.mrb[0].mxu0 %v349
    %v786 = vpop.f32.mrb[0].mxu0
    %v787 = vadd.f32 %v105, %v786
    %v788 = vpop.f32.mrb[0].mxu0
    %v789 = vpop.f32.mrb[0].mxu0
    %v790 = vadd.f32 %v105, %v789
    %v791 = vpop.f32.mrb[0].mxu0
    %792 = vmatprep.mubr.bf16.mxu0 %v535
    %793 = vmatmul.mubr.bf16.gmra.mrb[0].mxu0 %v351
    %v794 = vpop.f32.mrb[0].mxu0
    %v795 = vadd.f32 %v105, %v794
    %v796 = vpop.f32.mrb[0].mxu0
    %v797 = vpop.f32.mrb[0].mxu0
    %v798 = vadd.f32 %v105, %v797
    %v799 = vpop.f32.mrb[0].mxu0
    %800 = vmatprep.mubr.bf16.mxu0 %v538
    %801 = vmatmul.mubr.bf16.gmra.mrb[0].mxu0 %v353
    %v802 = vpop.f32.mrb[0].mxu0
    %v803 = vadd.f32 %v105, %v802
    %v804 = vpop.f32.mrb[0].mxu0
    %v805 = vpop.f32.mrb[0].mxu0
    %v806 = vadd.f32 %v105, %v805
    %v807 = vpop.f32.mrb[0].mxu0
    %808 = vmatprep.mubr.bf16.mxu0 %v541
    %809 = vmatmul.mubr.bf16.gmra.mrb[0].mxu0 %v355
    %v810 = vpop.f32.mrb[0].mxu0
    %v811 = vadd.f32 %v105, %v810
    %v812 = vpop.f32.mrb[0].mxu0
    %v813 = vpop.f32.mrb[0].mxu0
    %v814 = vadd.f32 %v105, %v813
    %v815 = vpop.f32.mrb[0].mxu0
    %816 = vmatprep.mubr.bf16.mxu0 %v544
    %817 = vmatmul.mubr.bf16.gmra.mrb[0].mxu0 %v357
    %v818 = vpop.f32.mrb[0].mxu0
    %v819 = vadd.f32 %v105, %v818
    %v820 = vpop.f32.mrb[0].mxu0
    %v821 = vpop.f32.mrb[0].mxu0
    %v822 = vadd.f32 %v105, %v821
    %v823 = vpop.f32.mrb[0].mxu0
    %824 = vmatprep.mubr.bf16.mxu0 %v547
    %825 = vmatmul.mubr.bf16.gmra.mrb[0].mxu0 %v359
    %v826 = vpop.f32.mrb[0].mxu0
    %v827 = vadd.f32 %v105, %v826
    %v828 = vpop.f32.mrb[0].mxu0
    %v829 = vpop.f32.mrb[0].mxu0
    %v830 = vadd.f32 %v105, %v829
    %v831 = vpop.f32.mrb[0].mxu0
    %832 = vmatprep.mubr.bf16.mxu0 %v550
    %833 = vmatmul.mubr.bf16.gmra.mrb[0].mxu0 %v361
    %v834 = vpop.f32.mrb[0].mxu0
    %v835 = vadd.f32 %v105, %v834
    %v836 = vpop.f32.mrb[0].mxu0
    %v837 = vpop.f32.mrb[0].mxu0
    %v838 = vadd.f32 %v105, %v837
    %v839 = vpop.f32.mrb[0].mxu0
    %840 = vdwg.mxu0
    %v841 = vmax.f32 %v587, 0.0
    %v842 = vmax.f32 %v590, 0.0
    %v843 = vmax.f32 %v595, 0.0
    %v844 = vmax.f32 %v598, 0.0
    %v845 = vmax.f32 %v603, 0.0
    %v846 = vmax.f32 %v606, 0.0
    %v847 = vmax.f32 %v611, 0.0
    %v848 = vmax.f32 %v614, 0.0
    %v849 = vmax.f32 %v619, 0.0
    %v850 = vmax.f32 %v622, 0.0
    %v851 = vmax.f32 %v627, 0.0
    %v852 = vmax.f32 %v630, 0.0
    %v853 = vmax.f32 %v635, 0.0
    %v854 = vmax.f32 %v638, 0.0
    %v855 = vmax.f32 %v643, 0.0
    %v856 = vmax.f32 %v646, 0.0
    %v857 = vmax.f32 %v651, 0.0
    %v858 = vmax.f32 %v654, 0.0
    %v859 = vmax.f32 %v659, 0.0
    %v860 = vmax.f32 %v662, 0.0
    %v861 = vmax.f32 %v667, 0.0
    %v862 = vmax.f32 %v670, 0.0
    %v863 = vmax.f32 %v675, 0.0
    %v864 = vmax.f32 %v678, 0.0
    %v865 = vmax.f32 %v683, 0.0
    %v866 = vmax.f32 %v686, 0.0
    %v867 = vmax.f32 %v691, 0.0
    %v868 = vmax.f32 %v694, 0.0
    %v869 = vmax.f32 %v699, 0.0
    %v870 = vmax.f32 %v702, 0.0
    %v871 = vmax.f32 %v707, 0.0
    %v872 = vmax.f32 %v710, 0.0
    %v873 = vmax.f32 %v715, 0.0
    %v874 = vmax.f32 %v718, 0.0
    %v875 = vmax.f32 %v723, 0.0
    %v876 = vmax.f32 %v726, 0.0
    %v877 = vmax.f32 %v731, 0.0
    %v878 = vmax.f32 %v734, 0.0
    %v879 = vmax.f32 %v739, 0.0
    %v880 = vmax.f32 %v742, 0.0
    %v881 = vmax.f32 %v747, 0.0
    %v882 = vmax.f32 %v750, 0.0
    %v883 = vmax.f32 %v755, 0.0
    %v884 = vmax.f32 %v758, 0.0
    %v885 = vmax.f32 %v763, 0.0
    %v886 = vmax.f32 %v766, 0.0
    %v887 = vmax.f32 %v771, 0.0
    %v888 = vmax.f32 %v774, 0.0
    %v889 = vmax.f32 %v779, 0.0
    %v890 = vmax.f32 %v782, 0.0
    %v891 = vmax.f32 %v787, 0.0
    %v892 = vmax.f32 %v790, 0.0
    %v893 = vmax.f32 %v795, 0.0
    %v894 = vmax.f32 %v798, 0.0
    %v895 = vmax.f32 %v803, 0.0
    %v896 = vmax.f32 %v806, 0.0
    %v897 = vmax.f32 %v811, 0.0
    %v898 = vmax.f32 %v814, 0.0
    %v899 = vmax.f32 %v819, 0.0
    %v900 = vmax.f32 %v822, 0.0
    %v901 = vmax.f32 %v827, 0.0
    %v902 = vmax.f32 %v830, 0.0
    %v903 = vmax.f32 %v835, 0.0
    %v904 = vmax.f32 %v838, 0.0
    %v905 = vpack.c.bf16 %v842, %v841
    %v906 = vpack.c.bf16 %v844, %v843
    %v907 = vpack.c.bf16 %v846, %v845
    %v908 = vpack.c.bf16 %v848, %v847
    %v909 = vpack.c.bf16 %v850, %v849
    %v910 = vpack.c.bf16 %v852, %v851
    %v911 = vpack.c.bf16 %v854, %v853
    %v912 = vpack.c.bf16 %v856, %v855
    %v913 = vpack.c.bf16 %v858, %v857
    %v914 = vpack.c.bf16 %v860, %v859
    %v915 = vpack.c.bf16 %v862, %v861
    %v916 = vpack.c.bf16 %v864, %v863
    %v917 = vpack.c.bf16 %v866, %v865
    %v918 = vpack.c.bf16 %v868, %v867
    %v919 = vpack.c.bf16 %v870, %v869
    %v920 = vpack.c.bf16 %v872, %v871
    %v921 = vpack.c.bf16 %v874, %v873
    %v922 = vpack.c.bf16 %v876, %v875
    %v923 = vpack.c.bf16 %v878, %v877
    %v924 = vpack.c.bf16 %v880, %v879
    %v925 = vpack.c.bf16 %v882, %v881
    %v926 = vpack.c.bf16 %v884, %v883
    %v927 = vpack.c.bf16 %v886, %v885
    %v928 = vpack.c.bf16 %v888, %v887
    %v929 = vpack.c.bf16 %v890, %v889
    %v930 = vpack.c.bf16 %v892, %v891
    %v931 = vpack.c.bf16 %v894, %v893
    %v932 = vpack.c.bf16 %v896, %v895
    %v933 = vpack.c.bf16 %v898, %v897
    %v934 = vpack.c.bf16 %v900, %v899
    %v935 = vpack.c.bf16 %v902, %v901
    %v936 = vpack.c.bf16 %v904, %v903
    %v969 = vunpack.c.l.b16 %v905
    %v970 = vunpack.c.h.b16 %v905
    %v971 = vunpack.c.l.b16 %v906
    %v972 = vunpack.c.h.b16 %v906
    %v973 = vunpack.c.l.b16 %v907
    %v974 = vunpack.c.h.b16 %v907
    %v975 = vunpack.c.l.b16 %v908
    %v976 = vunpack.c.h.b16 %v908
    %v977 = vunpack.c.l.b16 %v909
    %v978 = vunpack.c.h.b16 %v909
    %v979 = vunpack.c.l.b16 %v910
    %v980 = vunpack.c.h.b16 %v910
    %v981 = vunpack.c.l.b16 %v911
    %v982 = vunpack.c.h.b16 %v911
    %v983 = vunpack.c.l.b16 %v912
    %v984 = vunpack.c.h.b16 %v912
    %v985 = vunpack.c.l.b16 %v913
    %v986 = vunpack.c.h.b16 %v913
    %v987 = vunpack.c.l.b16 %v914
    %v988 = vunpack.c.h.b16 %v914
    %v989 = vunpack.c.l.b16 %v915
    %v990 = vunpack.c.h.b16 %v915
    %v991 = vunpack.c.l.b16 %v916
    %v992 = vunpack.c.h.b16 %v916
    %v993 = vunpack.c.l.b16 %v917
    %v994 = vunpack.c.h.b16 %v917
    %v995 = vunpack.c.l.b16 %v918
    %v996 = vunpack.c.h.b16 %v918
    %v997 = vunpack.c.l.b16 %v919
    %v998 = vunpack.c.h.b16 %v919
    %v999 = vunpack.c.l.b16 %v920
    %v1000 = vunpack.c.h.b16 %v920
    %v1001 = vunpack.c.l.b16 %v921
    %v1002 = vunpack.c.h.b16 %v921
    %v1003 = vunpack.c.l.b16 %v922
    %v1004 = vunpack.c.h.b16 %v922
    %v1005 = vunpack.c.l.b16 %v923
    %v1006 = vunpack.c.h.b16 %v923
    %v1007 = vunpack.c.l.b16 %v924
    %v1008 = vunpack.c.h.b16 %v924
    %v1009 = vunpack.c.l.b16 %v925
    %v1010 = vunpack.c.h.b16 %v925
    %v1011 = vunpack.c.l.b16 %v926
    %v1012 = vunpack.c.h.b16 %v926
    %v1013 = vunpack.c.l.b16 %v927
    %v1014 = vunpack.c.h.b16 %v927
    %v1015 = vunpack.c.l.b16 %v928
    %v1016 = vunpack.c.h.b16 %v928
    %v1017 = vunpack.c.l.b16 %v929
    %v1018 = vunpack.c.h.b16 %v929
    %v1019 = vunpack.c.l.b16 %v930
    %v1020 = vunpack.c.h.b16 %v930
    %v1021 = vunpack.c.l.b16 %v931
    %v1022 = vunpack.c.h.b16 %v931
    %v1023 = vunpack.c.l.b16 %v932
    %v1024 = vunpack.c.h.b16 %v932
    %v1025 = vunpack.c.l.b16 %v933
    %v1026 = vunpack.c.h.b16 %v933
    %v1027 = vunpack.c.l.b16 %v934
    %v1028 = vunpack.c.h.b16 %v934
    %v1029 = vunpack.c.l.b16 %v935
    %v1030 = vunpack.c.h.b16 %v935
    %v1031 = vunpack.c.l.b16 %v936
    %v1032 = vunpack.c.h.b16 %v936
    %v1033 = vpack.c.b16 %v969, %v969
    %v1034 = vpack.c.b16 %v970, %v970
    %v1035 = vpack.c.b16 %v971, %v971
    %v1036 = vpack.c.b16 %v972, %v972
    %v1037 = vpack.c.b16 %v973, %v973
    %v1038 = vpack.c.b16 %v974, %v974
    %v1039 = vpack.c.b16 %v975, %v975
    %v1040 = vpack.c.b16 %v976, %v976
    %v1041 = vpack.c.b16 %v977, %v977
    %v1042 = vpack.c.b16 %v978, %v978
    %v1043 = vpack.c.b16 %v979, %v979
    %v1044 = vpack.c.b16 %v980, %v980
    %v1045 = vpack.c.b16 %v981, %v981
    %v1046 = vpack.c.b16 %v982, %v982
    %v1047 = vpack.c.b16 %v983, %v983
    %v1048 = vpack.c.b16 %v984, %v984
    %v1049 = vpack.c.b16 %v985, %v985
    %v1050 = vpack.c.b16 %v986, %v986
    %v1051 = vpack.c.b16 %v987, %v987
    %v1052 = vpack.c.b16 %v988, %v988
    %v1053 = vpack.c.b16 %v989, %v989
    %v1054 = vpack.c.b16 %v990, %v990
    %v1055 = vpack.c.b16 %v991, %v991
    %v1056 = vpack.c.b16 %v992, %v992
    %v1057 = vpack.c.b16 %v993, %v993
    %v1058 = vpack.c.b16 %v994, %v994
    %v1059 = vpack.c.b16 %v995, %v995
    %v1060 = vpack.c.b16 %v996, %v996
    %v1061 = vpack.c.b16 %v997, %v997
    %v1062 = vpack.c.b16 %v998, %v998
    %v1063 = vpack.c.b16 %v999, %v999
    %v1064 = vpack.c.b16 %v1000, %v1000
    %v1065 = vpack.c.b16 %v1001, %v1001
    %v1066 = vpack.c.b16 %v1002, %v1002
    %v1067 = vpack.c.b16 %v1003, %v1003
    %v1068 = vpack.c.b16 %v1004, %v1004
    %v1069 = vpack.c.b16 %v1005, %v1005
    %v1070 = vpack.c.b16 %v1006, %v1006
    %v1071 = vpack.c.b16 %v1007, %v1007
    %v1072 = vpack.c.b16 %v1008, %v1008
    %v1073 = vpack.c.b16 %v1009, %v1009
    %v1074 = vpack.c.b16 %v1010, %v1010
    %v1075 = vpack.c.b16 %v1011, %v1011
    %v1076 = vpack.c.b16 %v1012, %v1012
    %v1077 = vpack.c.b16 %v1013, %v1013
    %v1078 = vpack.c.b16 %v1014, %v1014
    %v1079 = vpack.c.b16 %v1015, %v1015
    %v1080 = vpack.c.b16 %v1016, %v1016
    %v1081 = vpack.c.b16 %v1017, %v1017
    %v1082 = vpack.c.b16 %v1018, %v1018
    %v1083 = vpack.c.b16 %v1019, %v1019
    %v1084 = vpack.c.b16 %v1020, %v1020
    %v1085 = vpack.c.b16 %v1021, %v1021
    %v1086 = vpack.c.b16 %v1022, %v1022
    %v1087 = vpack.c.b16 %v1023, %v1023
    %v1088 = vpack.c.b16 %v1024, %v1024
    %v1089 = vpack.c.b16 %v1025, %v1025
    %v1090 = vpack.c.b16 %v1026, %v1026
    %v1091 = vpack.c.b16 %v1027, %v1027
    %v1092 = vpack.c.b16 %v1028, %v1028
    %v1093 = vpack.c.b16 %v1029, %v1029
    %v1094 = vpack.c.b16 %v1030, %v1030
    %v1095 = vpack.c.b16 %v1031, %v1031
    %v1096 = vpack.c.b16 %v1032, %v1032
    %1161 = vst [vmem:[#allocation2] sm:$0xf] %v1033
    %1162 = vst [vmem:[#allocation2 + $0x4] sm:$0xf] %v1034
    %1163 = vst [vmem:[#allocation2 + $0x8] sm:$0xf] %v1035
    %1164 = vst [vmem:[#allocation2 + $0xc] sm:$0xf] %v1036
    %1165 = vst [vmem:[#allocation2 + $0x10] sm:$0xf] %v1037
    %1166 = vst [vmem:[#allocation2 + $0x14] sm:$0xf] %v1038
    %1167 = vst [vmem:[#allocation2 + $0x18] sm:$0xf] %v1039
    %1168 = vst [vmem:[#allocation2 + $0x1c] sm:$0xf] %v1040
    %1169 = vst [vmem:[#allocation2 + $0x20] sm:$0xf] %v1041
    %1170 = vst [vmem:[#allocation2 + $0x24] sm:$0xf] %v1042
    %1171 = vst [vmem:[#allocation2 + $0x28] sm:$0xf] %v1043
    %1172 = vst [vmem:[#allocation2 + $0x2c] sm:$0xf] %v1044
    %1173 = vst [vmem:[#allocation2 + $0x30] sm:$0xf] %v1045
    %1174 = vst [vmem:[#allocation2 + $0x34] sm:$0xf] %v1046
    %1175 = vst [vmem:[#allocation2 + $0x38] sm:$0xf] %v1047
    %1176 = vst [vmem:[#allocation2 + $0x3c] sm:$0xf] %v1048
    %1177 = vst [vmem:[#allocation2 + $0x40] sm:$0xf] %v1049
    %1178 = vst [vmem:[#allocation2 + $0x44] sm:$0xf] %v1050
    %1179 = vst [vmem:[#allocation2 + $0x48] sm:$0xf] %v1051
    %1180 = vst [vmem:[#allocation2 + $0x4c] sm:$0xf] %v1052
    %1181 = vst [vmem:[#allocation2 + $0x50] sm:$0xf] %v1053
    %1182 = vst [vmem:[#allocation2 + $0x54] sm:$0xf] %v1054
    %1183 = vst [vmem:[#allocation2 + $0x58] sm:$0xf] %v1055
    %1184 = vst [vmem:[#allocation2 + $0x5c] sm:$0xf] %v1056
    %1185 = vst [vmem:[#allocation2 + $0x60] sm:$0xf] %v1057
    %1186 = vst [vmem:[#allocation2 + $0x64] sm:$0xf] %v1058
    %1187 = vst [vmem:[#allocation2 + $0x68] sm:$0xf] %v1059
    %1188 = vst [vmem:[#allocation2 + $0x6c] sm:$0xf] %v1060
    %1189 = vst [vmem:[#allocation2 + $0x70] sm:$0xf] %v1061
    %1190 = vst [vmem:[#allocation2 + $0x74] sm:$0xf] %v1062
    %1191 = vst [vmem:[#allocation2 + $0x78] sm:$0xf] %v1063
    %1192 = vst [vmem:[#allocation2 + $0x7c] sm:$0xf] %v1064
    %1193 = vst [vmem:[#allocation2 + $0x80] sm:$0xf] %v1065
    %1194 = vst [vmem:[#allocation2 + $0x84] sm:$0xf] %v1066
    %1195 = vst [vmem:[#allocation2 + $0x88] sm:$0xf] %v1067
    %1196 = vst [vmem:[#allocation2 + $0x8c] sm:$0xf] %v1068
    %1197 = vst [vmem:[#allocation2 + $0x90] sm:$0xf] %v1069
    %1198 = vst [vmem:[#allocation2 + $0x94] sm:$0xf] %v1070
    %1199 = vst [vmem:[#allocation2 + $0x98] sm:$0xf] %v1071
    %1200 = vst [vmem:[#allocation2 + $0x9c] sm:$0xf] %v1072
    %1201 = vst [vmem:[#allocation2 + $0xa0] sm:$0xf] %v1073
    %1202 = vst [vmem:[#allocation2 + $0xa4] sm:$0xf] %v1074
    %1203 = vst [vmem:[#allocation2 + $0xa8] sm:$0xf] %v1075
    %1204 = vst [vmem:[#allocation2 + $0xac] sm:$0xf] %v1076
    %1205 = vst [vmem:[#allocation2 + $0xb0] sm:$0xf] %v1077
    %1206 = vst [vmem:[#allocation2 + $0xb4] sm:$0xf] %v1078
    %1207 = vst [vmem:[#allocation2 + $0xb8] sm:$0xf] %v1079
    %1208 = vst [vmem:[#allocation2 + $0xbc] sm:$0xf] %v1080
    %1209 = vst [vmem:[#allocation2 + $0xc0] sm:$0xf] %v1081
    %1210 = vst [vmem:[#allocation2 + $0xc4] sm:$0xf] %v1082
    %1211 = vst [vmem:[#allocation2 + $0xc8] sm:$0xf] %v1083
    %1212 = vst [vmem:[#allocation2 + $0xcc] sm:$0xf] %v1084
    %1213 = vst [vmem:[#allocation2 + $0xd0] sm:$0xf] %v1085
    %1214 = vst [vmem:[#allocation2 + $0xd4] sm:$0xf] %v1086
    %1215 = vst [vmem:[#allocation2 + $0xd8] sm:$0xf] %v1087
    %1216 = vst [vmem:[#allocation2 + $0xdc] sm:$0xf] %v1088
    %1217 = vst [vmem:[#allocation2 + $0xe0] sm:$0xf] %v1089
    %1218 = vst [vmem:[#allocation2 + $0xe4] sm:$0xf] %v1090
    %1219 = vst [vmem:[#allocation2 + $0xe8] sm:$0xf] %v1091
    %1220 = vst [vmem:[#allocation2 + $0xec] sm:$0xf] %v1092
    %1221 = vst [vmem:[#allocation2 + $0xf0] sm:$0xf] %v1093
    %1222 = vst [vmem:[#allocation2 + $0xf4] sm:$0xf] %v1094
    %1223 = vst [vmem:[#allocation2 + $0xf8] sm:$0xf] %v1095
    %1224 = vst [vmem:[#allocation2 + $0xfc] sm:$0xf] %v1096
    // Predicated region
    $region14: #{conv_bn.1} parent=1 // pred_check
      _
    $region15: #{conv_bn.1} parent=1 // pred_check_branch
      %1226 = sbr.rel (0) target = $region17
    $region16: #{conv_bn.1} parent=1 // pred_region
      %s1228 = ssub.s32 4096, 4096
      %1229 = vsyncadd [#allocation3], %s1228
      %s1230 = sshll.u32 [#allocation2], 4
      %s1231 = int_to_ptr.vmem [resolvable:$true] %s1230
      %1236 = dma.vmem_to_hbm [thread:$0]  %s1231, 4096, %s3, [#allocation3], 64, 64, 4
    $region17: #{conv_bn.1} parent=1 // pred_fallthru
      _
    // Predicated region
    $region18: #{conv_bn.1} parent=1 // pred_check
      _
    $region19: #{conv_bn.1} parent=1 // pred_check_branch
      %1238 = sbr.rel (0) target = $region21
    $region20: #{conv_bn.1} parent=1 // pred_region
      %1239 = dma.done [#allocation3], 4096
    $region21: #{conv_bn.1} parent=1 // pred_fallthru
      _
    %1240 = vsyncpa [#allocation3], 1

</llo_original>
